<compile_context>
chip_gen: v6e
topology: v6e:2x2x1
jax: 0.10.0
libtpu: 0.0.40
codegen_flags: <defaults>
</compile_context>

<pallas_src>
import functools

import jax
import jax.numpy as jnp
from jax.experimental import pallas as pl
from jax.experimental.pallas import tpu as pltpu


def _dqn_kernel(x_ref, w1_ref, b1_ref, w2_ref, b2_ref,
                w3_ref, b3_ref, w4_ref, b4_ref, o_ref, *, action_size):
    # x arrives as f32 from HBM; cast to bf16 for MXU operands in-kernel.
    x = x_ref[...].astype(jnp.bfloat16)

    # Layer 1: Linear(obs, 64) + ReLU   (bf16 operands, f32 accumulate)
    h = jnp.dot(x, w1_ref[...], preferred_element_type=jnp.float32)
    h = jnp.maximum(h + b1_ref[...], 0.0).astype(jnp.bfloat16)
    # Layer 2: Linear(64, 64) + ReLU
    h = jnp.dot(h, w2_ref[...], preferred_element_type=jnp.float32)
    h = jnp.maximum(h + b2_ref[...], 0.0).astype(jnp.bfloat16)
    # Layer 3: Linear(64, 128) + ReLU
    h = jnp.dot(h, w3_ref[...], preferred_element_type=jnp.float32)
    h = jnp.maximum(h + b3_ref[...], 0.0).astype(jnp.bfloat16)
    # Layer 4: Linear(128, action_size). w4 is 128-lane padded for the MXU;
    # store only the real action_size lanes (last dim == full array dim).
    q = jnp.dot(h, w4_ref[...], preferred_element_type=jnp.float32)
    q = q[:, :action_size] + b4_ref[...]
    o_ref[...] = q.astype(o_ref.dtype)


def _round_up(n, m):
    return ((n + m - 1) // m) * m


def prepare_params(params):
    """One-time parameter prep (do NOT call per forward step).

    Casts matmul operands to bf16, pads w4's output dim to a 128-lane slab,
    keeps biases f32. Returns a dict ready for dqn_forward.
    """
    hidden3, action_size = params["w4"].shape
    n_pad = _round_up(action_size, 128)
    w4 = jnp.zeros((hidden3, n_pad), jnp.bfloat16).at[:, :action_size].set(
        params["w4"].astype(jnp.bfloat16))
    return {
        "w1": params["w1"].astype(jnp.bfloat16),
        "w2": params["w2"].astype(jnp.bfloat16),
        "w3": params["w3"].astype(jnp.bfloat16),
        "w4": w4,
        "b1": params["b1"].astype(jnp.float32).reshape(1, -1),
        "b2": params["b2"].astype(jnp.float32).reshape(1, -1),
        "b3": params["b3"].astype(jnp.float32).reshape(1, -1),
        "b4": params["b4"].astype(jnp.float32).reshape(1, -1),  # unpadded
    }


def dqn_forward(x, prepped, *, tile_batch=1024):
    """x: (B, observation_size) float32; prepped: output of prepare_params."""
    B, obs = x.shape
    action_size = prepped["b4"].shape[1]

    # Pad the batch only to the f32 sublane multiple (8). No TB-multiple pad.
    B_pad = _round_up(B, 8)
    if B_pad != B:
        x = jnp.pad(x, ((0, B_pad - B), (0, 0)))

    # Batch tile: big enough to amortize the ~0.35 us/step overhead, but keep
    # >= 2 grid steps when possible so the "parallel" axis can shard across
    # v7x's two TensorCores. Footprint at TB=1024 is ~1.5 MB, well within the
    # scoped-VMEM default on v5e/v6e/v7x.
    TB = min(tile_batch, max(8, _round_up(pl.cdiv(B_pad, 2), 8)))
    grid = (pl.cdiv(B_pad, TB),)

    w1, w2, w3, w4 = prepped["w1"], prepped["w2"], prepped["w3"], prepped["w4"]
    b1, b2, b3, b4 = prepped["b1"], prepped["b2"], prepped["b3"], prepped["b4"]

    # Advisory cost estimate so XLA schedules neighboring ops around the call.
    flops = 2 * B_pad * (obs * 64 + 64 * 64 + 64 * 128 + 128 * action_size)
    bytes_accessed = (
        B_pad * (obs + action_size) * 4                      # x in, q out
        + (obs * 64 + 64 * 64 + 64 * 128 + 128 * w4.shape[1]) * 2  # bf16 weights
        + (64 + 64 + 128 + action_size) * 4)                 # f32 biases
    cost = pl.CostEstimate(flops=flops, transcendentals=0,
                           bytes_accessed=bytes_accessed)

    # Explicit per-argument BlockSpecs. Weights/biases use a constant
    # index_map -> resident in VMEM across all grid steps; x/out stream.
    in_specs = [
        pl.BlockSpec((TB, obs), lambda i: (i, 0)),   # x (batch-tiled, f32)
        pl.BlockSpec(w1.shape, lambda i: (0, 0)),    # w1
        pl.BlockSpec(b1.shape, lambda i: (0, 0)),    # b1
        pl.BlockSpec(w2.shape, lambda i: (0, 0)),    # w2
        pl.BlockSpec(b2.shape, lambda i: (0, 0)),    # b2
        pl.BlockSpec(w3.shape, lambda i: (0, 0)),    # w3
        pl.BlockSpec(b3.shape, lambda i: (0, 0)),    # b3
        pl.BlockSpec(w4.shape, lambda i: (0, 0)),    # w4 (128-lane padded)
        pl.BlockSpec(b4.shape, lambda i: (0, 0)),    # b4 (unpadded)
    ]
    # Last dim == full array dim (action_size), so no 128-lane padding needed.
    out_specs = pl.BlockSpec((TB, action_size), lambda i: (i, 0))

    out = pl.pallas_call(
        functools.partial(_dqn_kernel, action_size=action_size),
        out_shape=jax.ShapeDtypeStruct((B_pad, action_size), jnp.float32),
        grid=grid,
        in_specs=in_specs,
        out_specs=out_specs,
        compiler_params=pltpu.CompilerParams(
            dimension_semantics=("parallel",)),
        cost_estimate=cost,
    )(x, w1, b1, w2, b2, w3, b3, w4, b4)

    return out[:B] if B_pad != B else out


def init_dqn_params(key, action_size, observation_size):
    """Deterministic synthetic init matching nn.Linear shapes.

    Torch nn.Linear(in, out) holds weight (out, in); we keep the transposed
    (in, out) layout so the kernel can do x @ W directly.
    """
    dims = [(observation_size, 64), (64, 64), (64, 128), (128, action_size)]
    params = {}
    for i, (din, dout) in enumerate(dims, start=1):
        key, kw, kb = jax.random.split(key, 3)
        bound = 1.0 / jnp.sqrt(din)  # same scale as torch default init
        params[f"w{i}"] = jax.random.uniform(
            kw, (din, dout), jnp.float32, minval=-bound, maxval=bound)
        params[f"b{i}"] = jax.random.uniform(
            kb, (1, dout), jnp.float32, minval=-bound, maxval=bound)
    return params


def dqn_reference_bf16(x, params):
    """Plain-JAX reference emulating the kernel's bf16-operand / f32-acc math."""
    def lin(h, w, b):
        return jnp.dot(h.astype(jnp.bfloat16), w.astype(jnp.bfloat16),
                       preferred_element_type=jnp.float32) + b
    h = jnp.maximum(lin(x, params["w1"], params["b1"]), 0.0)
    h = jnp.maximum(lin(h, params["w2"], params["b2"]), 0.0)
    h = jnp.maximum(lin(h, params["w3"], params["b3"]), 0.0)
    return lin(h, params["w4"], params["b4"])


def dqn_reference_f32(x, params):
    """Full-precision reference (sanity check only)."""
    h = jnp.maximum(x @ params["w1"] + params["b1"], 0.0)
    h = jnp.maximum(h @ params["w2"] + params["b2"], 0.0)
    h = jnp.maximum(h @ params["w3"] + params["b3"], 0.0)
    return h @ params["w4"] + params["b4"]


if __name__ == "__main__":
    observation_size = 16
    action_size = 8
    batch = 4

    key = jax.random.PRNGKey(0)
    key, kx = jax.random.split(key)
    x = jax.random.normal(kx, (batch, observation_size), jnp.float32)
    params = init_dqn_params(key, action_size, observation_size)

    prepped = prepare_params(params)       # one-time prep, reused every call
    out = dqn_forward(x, prepped)
    out = jax.block_until_ready(out)
    assert out.shape == (batch, action_size)

    # NOTE: matmul operands run in bf16 (f32 accumulate); small precision loss
    # vs the f32 PyTorch model is expected and bounded by the checks below.
    ref_bf16 = dqn_reference_bf16(x, params)
    ref_f32 = dqn_reference_f32(x, params)
    assert jnp.allclose(out, ref_bf16, atol=1e-3, rtol=1e-3), \
        "mismatch vs bf16-emulated reference"
    assert jnp.allclose(out, ref_f32, atol=1e-1, rtol=1e-1), \
        "mismatch vs f32 reference (sanity)"
    print("KERNEL_OK")
</pallas_src>

<mosaic_0001>
module attributes {stable_mosaic.version = 11 : i64} {
  func.func @_dqn_kernel(%arg0: i32, %arg1: memref<8x16xf32, #tpu.memory_space<vmem>>, %arg2: memref<16x64xbf16, #tpu.memory_space<vmem>>, %arg3: memref<1x64xf32, #tpu.memory_space<vmem>>, %arg4: memref<64x64xbf16, #tpu.memory_space<vmem>>, %arg5: memref<1x64xf32, #tpu.memory_space<vmem>>, %arg6: memref<64x128xbf16, #tpu.memory_space<vmem>>, %arg7: memref<1x128xf32, #tpu.memory_space<vmem>>, %arg8: memref<128x128xbf16, #tpu.memory_space<vmem>>, %arg9: memref<1x8xf32, #tpu.memory_space<vmem>>, %arg10: memref<8x8xf32, #tpu.memory_space<vmem>>) attributes {dimension_semantics = [#tpu.dimension_semantics<parallel>], iteration_bounds = array<i64: 1>, scalar_prefetch = 0 : i64, scratch_operands = 0 : i64, tpu.core_type = #tpu.core_type<tc>, window_params = [{transform_indices = @transform_0, window_bounds = array<i64: 8, 16>}, {pipeline_mode = #tpu.pipeline_mode<synchronous>, transform_indices = @transform_1, window_bounds = array<i64: 16, 64>}, {pipeline_mode = #tpu.pipeline_mode<synchronous>, transform_indices = @transform_2, window_bounds = array<i64: 1, 64>}, {pipeline_mode = #tpu.pipeline_mode<synchronous>, transform_indices = @transform_3, window_bounds = array<i64: 64, 64>}, {pipeline_mode = #tpu.pipeline_mode<synchronous>, transform_indices = @transform_4, window_bounds = array<i64: 1, 64>}, {pipeline_mode = #tpu.pipeline_mode<synchronous>, transform_indices = @transform_5, window_bounds = array<i64: 64, 128>}, {pipeline_mode = #tpu.pipeline_mode<synchronous>, transform_indices = @transform_6, window_bounds = array<i64: 1, 128>}, {pipeline_mode = #tpu.pipeline_mode<synchronous>, transform_indices = @transform_7, window_bounds = array<i64: 128, 128>}, {pipeline_mode = #tpu.pipeline_mode<synchronous>, transform_indices = @transform_8, window_bounds = array<i64: 1, 8>}, {transform_indices = @transform_9, window_bounds = array<i64: 8, 8>}]} {
    %c0 = arith.constant 0 : index
    %c0_0 = arith.constant 0 : index
    %0 = vector.load %arg1[%c0, %c0_0] : memref<8x16xf32, #tpu.memory_space<vmem>>, vector<8x16xf32>
    %1 = arith.truncf %0 : vector<8x16xf32> to vector<8x16xbf16>
    %c0_1 = arith.constant 0 : index
    %c0_2 = arith.constant 0 : index
    %2 = vector.load %arg2[%c0_1, %c0_2] : memref<16x64xbf16, #tpu.memory_space<vmem>>, vector<16x64xbf16>
    %cst = arith.constant dense<0.000000e+00> : vector<8x64xf32>
    %3 = tpu.matmul %1, %2, %cst {dimension_numbers = #tpu.dot_dimension_numbers<[1], [0], [0], [1], [0, 0, 1, 1], [], []>} : vector<8x16xbf16>, vector<16x64xbf16>, vector<8x64xf32> -> vector<8x64xf32>
    %c0_3 = arith.constant 0 : index
    %c0_4 = arith.constant 0 : index
    %4 = vector.load %arg3[%c0_3, %c0_4] : memref<1x64xf32, #tpu.memory_space<vmem>>, vector<1x64xf32>
    %5 = vector.broadcast %4 : vector<1x64xf32> to vector<8x64xf32>
    %6 = arith.addf %3, %5 : vector<8x64xf32>
    %cst_5 = arith.constant 0.000000e+00 : f32
    %7 = vector.broadcast %cst_5 : f32 to vector<8x64xf32>
    %8 = arith.maximumf %6, %7 : vector<8x64xf32>
    %9 = arith.truncf %8 : vector<8x64xf32> to vector<8x64xbf16>
    %c0_6 = arith.constant 0 : index
    %c0_7 = arith.constant 0 : index
    %10 = vector.load %arg4[%c0_6, %c0_7] : memref<64x64xbf16, #tpu.memory_space<vmem>>, vector<64x64xbf16>
    %cst_8 = arith.constant dense<0.000000e+00> : vector<8x64xf32>
    %11 = tpu.matmul %9, %10, %cst_8 {dimension_numbers = #tpu.dot_dimension_numbers<[1], [0], [0], [1], [0, 0, 1, 1], [], []>} : vector<8x64xbf16>, vector<64x64xbf16>, vector<8x64xf32> -> vector<8x64xf32>
    %c0_9 = arith.constant 0 : index
    %c0_10 = arith.constant 0 : index
    %12 = vector.load %arg5[%c0_9, %c0_10] : memref<1x64xf32, #tpu.memory_space<vmem>>, vector<1x64xf32>
    %13 = vector.broadcast %12 : vector<1x64xf32> to vector<8x64xf32>
    %14 = arith.addf %11, %13 : vector<8x64xf32>
    %cst_11 = arith.constant 0.000000e+00 : f32
    %15 = vector.broadcast %cst_11 : f32 to vector<8x64xf32>
    %16 = arith.maximumf %14, %15 : vector<8x64xf32>
    %17 = arith.truncf %16 : vector<8x64xf32> to vector<8x64xbf16>
    %c0_12 = arith.constant 0 : index
    %c0_13 = arith.constant 0 : index
    %18 = vector.load %arg6[%c0_12, %c0_13] : memref<64x128xbf16, #tpu.memory_space<vmem>>, vector<64x128xbf16>
    %cst_14 = arith.constant dense<0.000000e+00> : vector<8x128xf32>
    %19 = tpu.matmul %17, %18, %cst_14 {dimension_numbers = #tpu.dot_dimension_numbers<[1], [0], [0], [1], [0, 0, 1, 1], [], []>} : vector<8x64xbf16>, vector<64x128xbf16>, vector<8x128xf32> -> vector<8x128xf32>
    %c0_15 = arith.constant 0 : index
    %c0_16 = arith.constant 0 : index
    %20 = vector.load %arg7[%c0_15, %c0_16] : memref<1x128xf32, #tpu.memory_space<vmem>>, vector<1x128xf32>
    %21 = vector.broadcast %20 : vector<1x128xf32> to vector<8x128xf32>
    %22 = arith.addf %19, %21 : vector<8x128xf32>
    %cst_17 = arith.constant 0.000000e+00 : f32
    %23 = vector.broadcast %cst_17 : f32 to vector<8x128xf32>
    %24 = arith.maximumf %22, %23 : vector<8x128xf32>
    %25 = arith.truncf %24 : vector<8x128xf32> to vector<8x128xbf16>
    %c0_18 = arith.constant 0 : index
    %c0_19 = arith.constant 0 : index
    %26 = vector.load %arg8[%c0_18, %c0_19] : memref<128x128xbf16, #tpu.memory_space<vmem>>, vector<128x128xbf16>
    %cst_20 = arith.constant dense<0.000000e+00> : vector<8x128xf32>
    %27 = tpu.matmul %25, %26, %cst_20 {dimension_numbers = #tpu.dot_dimension_numbers<[1], [0], [0], [1], [0, 0, 1, 1], [], []>} : vector<8x128xbf16>, vector<128x128xbf16>, vector<8x128xf32> -> vector<8x128xf32>
    %28 = vector.extract_strided_slice %27 {offsets = [0, 0], sizes = [8, 8], strides = [1, 1]} : vector<8x128xf32> to vector<8x8xf32>
    %c0_21 = arith.constant 0 : index
    %c0_22 = arith.constant 0 : index
    %29 = vector.load %arg9[%c0_21, %c0_22] : memref<1x8xf32, #tpu.memory_space<vmem>>, vector<1x8xf32>
    %30 = vector.broadcast %29 : vector<1x8xf32> to vector<8x8xf32>
    %31 = arith.addf %28, %30 : vector<8x8xf32>
    %c0_23 = arith.constant 0 : index
    %c0_24 = arith.constant 0 : index
    %32 = vector.load %arg10[%c0_23, %c0_24] : memref<8x8xf32, #tpu.memory_space<vmem>>, vector<8x8xf32>
    tpu.vector_store %arg10[%c0_23, %c0_24], %31 {strides = array<i32>} : memref<8x8xf32, #tpu.memory_space<vmem>>, vector<8x8xf32>,
    return
  }
  func.func @transform_0(%arg0: i32) -> (i32, i32) {
    %c0_i32 = arith.constant 0 : i32
    %c0_i32_0 = arith.constant 0 : i32
    return %arg0, %c0_i32 : i32, i32
  }
  func.func @transform_1(%arg0: i32) -> (i32, i32) {
    %c0_i32 = arith.constant 0 : i32
    %c0_i32_0 = arith.constant 0 : i32
    %c0_i32_1 = arith.constant 0 : i32
    return %c0_i32, %c0_i32_0 : i32, i32
  }
  func.func @transform_2(%arg0: i32) -> (i32, i32) {
    %c0_i32 = arith.constant 0 : i32
    %c0_i32_0 = arith.constant 0 : i32
    %c0_i32_1 = arith.constant 0 : i32
    return %c0_i32, %c0_i32_0 : i32, i32
  }
  func.func @transform_3(%arg0: i32) -> (i32, i32) {
    %c0_i32 = arith.constant 0 : i32
    %c0_i32_0 = arith.constant 0 : i32
    %c0_i32_1 = arith.constant 0 : i32
    return %c0_i32, %c0_i32_0 : i32, i32
  }
  func.func @transform_4(%arg0: i32) -> (i32, i32) {
    %c0_i32 = arith.constant 0 : i32
    %c0_i32_0 = arith.constant 0 : i32
    %c0_i32_1 = arith.constant 0 : i32
    return %c0_i32, %c0_i32_0 : i32, i32
  }
  func.func @transform_5(%arg0: i32) -> (i32, i32) {
    %c0_i32 = arith.constant 0 : i32
    %c0_i32_0 = arith.constant 0 : i32
    %c0_i32_1 = arith.constant 0 : i32
    return %c0_i32, %c0_i32_0 : i32, i32
  }
  func.func @transform_6(%arg0: i32) -> (i32, i32) {
    %c0_i32 = arith.constant 0 : i32
    %c0_i32_0 = arith.constant 0 : i32
    %c0_i32_1 = arith.constant 0 : i32
    return %c0_i32, %c0_i32_0 : i32, i32
  }
  func.func @transform_7(%arg0: i32) -> (i32, i32) {
    %c0_i32 = arith.constant 0 : i32
    %c0_i32_0 = arith.constant 0 : i32
    %c0_i32_1 = arith.constant 0 : i32
    return %c0_i32, %c0_i32_0 : i32, i32
  }
  func.func @transform_8(%arg0: i32) -> (i32, i32) {
    %c0_i32 = arith.constant 0 : i32
    %c0_i32_0 = arith.constant 0 : i32
    %c0_i32_1 = arith.constant 0 : i32
    return %c0_i32, %c0_i32_0 : i32, i32
  }
  func.func @transform_9(%arg0: i32) -> (i32, i32) {
    %c0_i32 = arith.constant 0 : i32
    %c0_i32_0 = arith.constant 0 : i32
    return %arg0, %c0_i32 : i32, i32
  }
}

</mosaic_0001>

<llo_original>
// kernel: tpu_custom_call.1
$region0: #{tpu_custom_call.1}
  #allocation0 [shape = 'u32[]', space=smem, size = 0x4, offset = 0x4, fixed_abs, tag = 'smem constant byte address 0x4 - core index']
  #allocation1 [shape = 'u32[144,128]{1,0:T(1,128)}', space=vmem, size = 0x12000, scoped, tag = 'internal scratch']
  %s0 = inlined_call_operand.hbm [shape: f32[8,16], index: 0, kind: input, shape index: {}]
  %s1 = inlined_call_operand.hbm [shape: bf16[16,64], index: 1, kind: input, shape index: {}]
  %s2 = inlined_call_operand.vmem [shape: f32[1,64], index: 2, kind: input, shape index: {}]
  %s3 = inlined_call_operand.hbm [shape: bf16[64,64], index: 3, kind: input, shape index: {}]
  %s4 = inlined_call_operand.vmem [shape: f32[1,64], index: 4, kind: input, shape index: {}]
  %s5 = inlined_call_operand.hbm [shape: bf16[64,128], index: 5, kind: input, shape index: {}]
  %s6 = inlined_call_operand.vmem [shape: f32[1,128], index: 6, kind: input, shape index: {}]
  %s7 = inlined_call_operand.hbm [shape: bf16[128,128], index: 7, kind: input, shape index: {}]
  %s8 = inlined_call_operand.vmem [shape: f32[1,8], index: 8, kind: input, shape index: {}]
  %s9 = inlined_call_operand.hbm [shape: f32[8,8], index: 9, kind: output, shape index: {}]
  %s10 = sld [smem:[#allocation0]]
  $region66: #{tpu_custom_call.1} parent=0
    _
  %s12 = ssub.s32 1, %s10
  %s13 = scalar_select 0, %s12, %s10
  $region1: #{tpu_custom_call.1} parent=0
    #allocation2 [shape = 'u8[4096]{0}', space=vmem, size = 0x1000, scoped, tag = 'input window, operand 0, single buffered']
    #allocation3 [shape = 's32[1]{0}', space=sflag, size = 0x4, scoped, tag = 'scoped memory for tpu_custom_call.1']
    #allocation4 [shape = 's32[1]{0}', space=sflag, size = 0x4, scoped, tag = 'scoped memory for tpu_custom_call.1']
    #allocation5 [shape = 'u8[4096]{0}', space=vmem, size = 0x1000, scoped, tag = 'input window, operand 1, single buffered']
    #allocation6 [shape = 's32[1]{0}', space=sflag, size = 0x4, scoped, tag = 'scoped memory for tpu_custom_call.1']
    #allocation7 [shape = 'u8[16384]{0}', space=vmem, size = 0x4000, scoped, tag = 'input window, operand 3, single buffered']
    #allocation8 [shape = 'u8[16384]{0}', space=vmem, size = 0x4000, scoped, tag = 'input window, operand 5, single buffered']
    #allocation9 [shape = 's32[1]{0}', space=sflag, size = 0x4, scoped, tag = 'scoped memory for tpu_custom_call.1']
    #allocation10 [shape = 'u8[32768]{0}', space=vmem, size = 0x8000, scoped, tag = 'input window, operand 7, single buffered']
    #allocation11 [shape = 'u8[4096]{0}', space=vmem, size = 0x1000, scoped, tag = 'output window, operand 0, single buffered']
    %14 = vsyncpa [#allocation3], 0
    %15 = vsyncpa [#allocation6], 0
    %16 = vsyncpa [#allocation9], 0
    %17 = vsyncpa [#allocation4], 0
    // Predicated region
    $region2: #{tpu_custom_call.1} parent=1 // pred_check
      _
    $region3: #{tpu_custom_call.1} parent=1 // pred_check_branch
      %19 = sbr.rel (0) target = $region5
    $region4: #{tpu_custom_call.1} parent=1 // pred_region
      %s21 = ssub.s32 128, 128
      %22 = vsyncadd [#allocation3], %s21
      %s24 = sshll.u32 [#allocation2], 4
      %s25 = int_to_ptr.vmem [resolvable:$true] %s24
      %27 = dma.hbm_to_vmem [thread:$0]  %s0, 128, %s25, [#allocation3]
    $region5: #{tpu_custom_call.1} parent=1 // pred_fallthru
      _
    // Predicated region
    $region6: #{tpu_custom_call.1} parent=1 // pred_check
      _
    $region7: #{tpu_custom_call.1} parent=1 // pred_check_branch
      %29 = sbr.rel (0) target = $region9
    $region8: #{tpu_custom_call.1} parent=1 // pred_region
      %s31 = ssub.s32 128, 128
      %32 = vsyncadd [#allocation6], %s31
      %s33 = sshll.u32 [#allocation5], 4
      %s34 = int_to_ptr.vmem [resolvable:$true] %s33
      %39 = dma.hbm_to_vmem [thread:$0]  %s1, 128, %s34, [#allocation6], 64, 64, 4
    $region9: #{tpu_custom_call.1} parent=1 // pred_fallthru
      _
    // Predicated region
    $region10: #{tpu_custom_call.1} parent=1 // pred_check
      _
    $region11: #{tpu_custom_call.1} parent=1 // pred_check_branch
      %41 = sbr.rel (0) target = $region13
    $region12: #{tpu_custom_call.1} parent=1 // pred_region
      _
    $region13: #{tpu_custom_call.1} parent=1 // pred_fallthru
      _
    // Predicated region
    $region14: #{tpu_custom_call.1} parent=1 // pred_check
      _
    $region15: #{tpu_custom_call.1} parent=1 // pred_check_branch
      %43 = sbr.rel (0) target = $region17
    $region16: #{tpu_custom_call.1} parent=1 // pred_region
      %s45 = ssub.s32 512, 512
      %46 = vsyncadd [#allocation6], %s45
      %s47 = sshll.u32 [#allocation7], 4
      %s48 = int_to_ptr.vmem [resolvable:$true] %s47
      %53 = dma.hbm_to_vmem [thread:$0]  %s3, 512, %s48, [#allocation6], 64, 64, 4
    $region17: #{tpu_custom_call.1} parent=1 // pred_fallthru
      _
    // Predicated region
    $region18: #{tpu_custom_call.1} parent=1 // pred_check
      _
    $region19: #{tpu_custom_call.1} parent=1 // pred_check_branch
      %55 = sbr.rel (0) target = $region21
    $region20: #{tpu_custom_call.1} parent=1 // pred_region
      _
    $region21: #{tpu_custom_call.1} parent=1 // pred_fallthru
      _
    // Predicated region
    $region22: #{tpu_custom_call.1} parent=1 // pred_check
      _
    $region23: #{tpu_custom_call.1} parent=1 // pred_check_branch
      %57 = sbr.rel (0) target = $region25
    $region24: #{tpu_custom_call.1} parent=1 // pred_region
      %s59 = ssub.s32 512, 512
      %60 = vsyncadd [#allocation9], %s59
      %s61 = sshll.u32 [#allocation8], 4
      %s62 = int_to_ptr.vmem [resolvable:$true] %s61
      %67 = dma.hbm_to_vmem [thread:$0]  %s5, 512, %s62, [#allocation9], 64, 64, 4
    $region25: #{tpu_custom_call.1} parent=1 // pred_fallthru
      _
    // Predicated region
    $region26: #{tpu_custom_call.1} parent=1 // pred_check
      _
    $region27: #{tpu_custom_call.1} parent=1 // pred_check_branch
      %69 = sbr.rel (0) target = $region29
    $region28: #{tpu_custom_call.1} parent=1 // pred_region
      _
    $region29: #{tpu_custom_call.1} parent=1 // pred_fallthru
      _
    // Predicated region
    $region30: #{tpu_custom_call.1} parent=1 // pred_check
      _
    $region31: #{tpu_custom_call.1} parent=1 // pred_check_branch
      %71 = sbr.rel (0) target = $region33
    $region32: #{tpu_custom_call.1} parent=1 // pred_region
      %s73 = ssub.s32 1024, 1024
      %74 = vsyncadd [#allocation9], %s73
      %s75 = sshll.u32 [#allocation10], 4
      %s76 = int_to_ptr.vmem [resolvable:$true] %s75
      %81 = dma.hbm_to_vmem [thread:$0]  %s7, 1024, %s76, [#allocation9], 64, 64, 4
    $region33: #{tpu_custom_call.1} parent=1 // pred_fallthru
      _
    // Predicated region
    $region34: #{tpu_custom_call.1} parent=1 // pred_check
      _
    $region35: #{tpu_custom_call.1} parent=1 // pred_check_branch
      %83 = sbr.rel (0) target = $region37
    $region36: #{tpu_custom_call.1} parent=1 // pred_region
      _
    $region37: #{tpu_custom_call.1} parent=1 // pred_fallthru
      _
    // Predicated region
    $region38: #{tpu_custom_call.1} parent=1 // pred_check
      _
    $region39: #{tpu_custom_call.1} parent=1 // pred_check_branch
      %85 = sbr.rel (0) target = $region41
    $region40: #{tpu_custom_call.1} parent=1 // pred_region
      %86 = dma.done [#allocation3], 128
    $region41: #{tpu_custom_call.1} parent=1 // pred_fallthru
      _
    // Predicated region
    $region42: #{tpu_custom_call.1} parent=1 // pred_check
      _
    $region43: #{tpu_custom_call.1} parent=1 // pred_check_branch
      %88 = sbr.rel (0) target = $region45
    $region44: #{tpu_custom_call.1} parent=1 // pred_region
      %89 = dma.done [#allocation6], 128
    $region45: #{tpu_custom_call.1} parent=1 // pred_fallthru
      _
    // Predicated region
    $region46: #{tpu_custom_call.1} parent=1 // pred_check
      _
    $region47: #{tpu_custom_call.1} parent=1 // pred_check_branch
      %91 = sbr.rel (0) target = $region49
    $region48: #{tpu_custom_call.1} parent=1 // pred_region
      %92 = dma.done [#allocation6], 512
    $region49: #{tpu_custom_call.1} parent=1 // pred_fallthru
      _
    // Predicated region
    $region50: #{tpu_custom_call.1} parent=1 // pred_check
      _
    $region51: #{tpu_custom_call.1} parent=1 // pred_check_branch
      %94 = sbr.rel (0) target = $region53
    $region52: #{tpu_custom_call.1} parent=1 // pred_region
      %95 = dma.done [#allocation9], 512
    $region53: #{tpu_custom_call.1} parent=1 // pred_fallthru
      _
    // Predicated region
    $region54: #{tpu_custom_call.1} parent=1 // pred_check
      _
    $region55: #{tpu_custom_call.1} parent=1 // pred_check_branch
      %97 = sbr.rel (0) target = $region57
    $region56: #{tpu_custom_call.1} parent=1 // pred_region
      %98 = dma.done [#allocation9], 1024
    $region57: #{tpu_custom_call.1} parent=1 // pred_fallthru
      _
    %v100 = vld [vmem:[#allocation2] sm:$0xff]
    %v101 = vpack.c.bf16 %v100, %v100
    %v102 = vld [vmem:[#allocation5] sm:$0xf]
    %v103 = vld [vmem:[#allocation5 + $0x4] sm:$0xf]
    %v104 = vld [vmem:[%s2] sm:$0x1]
    %v106 = vlaneseq
    %v107 = vshrl.u32 %v106, 7
    %v108 = vsub.s32 0, %v107
    %v109 = vrot.slane %v104, %v108
    %v113 = vunpack.c.l.b16 %v102
    %v114 = vunpack.c.l.b16 %v103
    %v115 = vpack.c.b16 %v114, %v113
    %vm117 = vcmask 130048
    %v119 = vsel %vm117, %v101, 0
    %121 = vmatprep.subr.bf16.mxu0 0
    %122 = vmatpush1.bf16.msra.mxu0 0
    %123 = vmatprep.subr.bf16.mxu0 0
    %124 = vmatpush1.bf16.msra.mxu0 0
    %125 = vmatprep.subr.bf16.mxu0 0
    %126 = vmatpush1.bf16.msra.mxu0 0
    %127 = vmatprep.subr.bf16.mxu0 0
    %128 = vmatpush1.bf16.msra.mxu0 0
    %129 = vmatprep.subr.bf16.mxu0 0
    %130 = vmatpush1.bf16.msra.mxu0 0
    %131 = vmatprep.subr.bf16.mxu0 0
    %132 = vmatpush1.bf16.msra.mxu0 0
    %133 = vmatprep.subr.bf16.mxu0 0
    %134 = vmatpush1.bf16.msra.mxu0 0
    %135 = vmatprep.subr.bf16.mxu0 0
    %136 = vmatpush1.bf16.msra.mxu0 %v115
    %137 = vmatprep.subr.bf16.mxu0 0
    %138 = vmatpush2.bf16.msra.mxu0 0
    %139 = vmatprep.subr.bf16.mxu0 0
    %140 = vmatpush2.bf16.msra.mxu0 0
    %141 = vmatprep.subr.bf16.mxu0 0
    %142 = vmatpush2.bf16.msra.mxu0 0
    %143 = vmatprep.subr.bf16.mxu0 0
    %144 = vmatpush2.bf16.msra.mxu0 0
    %145 = vmatprep.subr.bf16.mxu0 0
    %146 = vmatpush2.bf16.msra.mxu0 0
    %147 = vmatprep.subr.bf16.mxu0 0
    %148 = vmatpush2.bf16.msra.mxu0 0
    %149 = vmatprep.subr.bf16.mxu0 0
    %150 = vmatpush2.bf16.msra.mxu0 0
    %151 = vmatprep.subr.bf16.mxu0 0
    %152 = vmatpush2.bf16.msra.mxu0 0
    %153 = vmatprep.mubr.bf16.mxu0 0
    %154 = vmatmul.mubr.bf16.gmra.mxu0 %v119
    %v155 = vpop.f32.mrf.mxu0
    %v156 = vadd.f32 %v109, %v155
    %v157 = vpop.f32.mrf.mxu0
    %v158 = vpop.f32.mrf.mxu0
    %v159 = vpop.f32.mrf.mxu0
    %160 = vdwg.mxu0
    %v161 = vmax.f32 %v156, 0.0
    %v162 = vpack.c.bf16 %v161, %v161
    %v163 = vld [vmem:[#allocation7] sm:$0xf]
    %v164 = vld [vmem:[#allocation7 + $0x4] sm:$0xf]
    %v165 = vld [vmem:[#allocation7 + $0x8] sm:$0xf]
    %v166 = vld [vmem:[#allocation7 + $0xc] sm:$0xf]
    %v167 = vld [vmem:[#allocation7 + $0x10] sm:$0xf]
    %v168 = vld [vmem:[#allocation7 + $0x14] sm:$0xf]
    %v169 = vld [vmem:[#allocation7 + $0x18] sm:$0xf]
    %v170 = vld [vmem:[#allocation7 + $0x1c] sm:$0xf]
    %v171 = vld [vmem:[%s4] sm:$0x1]
    %v173 = vlaneseq
    %v174 = vshrl.u32 %v173, 7
    %v175 = vsub.s32 0, %v174
    %v176 = vrot.slane %v171, %v175
    %v186 = vunpack.c.l.b16 %v163
    %v187 = vunpack.c.l.b16 %v164
    %v188 = vunpack.c.l.b16 %v165
    %v189 = vunpack.c.l.b16 %v166
    %v190 = vunpack.c.l.b16 %v167
    %v191 = vunpack.c.l.b16 %v168
    %v192 = vunpack.c.l.b16 %v169
    %v193 = vunpack.c.l.b16 %v170
    %v194 = vpack.c.b16 %v187, %v186
    %v195 = vpack.c.b16 %v189, %v188
    %v196 = vpack.c.b16 %v191, %v190
    %v197 = vpack.c.b16 %v193, %v192
    %vm202 = vcmask 523264
    %v204 = vsel %vm202, %v162, 0
    %206 = vmatprep.subr.bf16.mxu0 0
    %207 = vmatpush1.bf16.msra.mxu0 0
    %208 = vmatprep.subr.bf16.mxu0 0
    %209 = vmatpush1.bf16.msra.mxu0 0
    %210 = vmatprep.subr.bf16.mxu0 0
    %211 = vmatpush1.bf16.msra.mxu0 0
    %212 = vmatprep.subr.bf16.mxu0 0
    %213 = vmatpush1.bf16.msra.mxu0 0
    %214 = vmatprep.subr.bf16.mxu0 0
    %215 = vmatpush1.bf16.msra.mxu0 %v197
    %216 = vmatprep.subr.bf16.mxu0 0
    %217 = vmatpush1.bf16.msra.mxu0 %v196
    %218 = vmatprep.subr.bf16.mxu0 0
    %219 = vmatpush1.bf16.msra.mxu0 %v195
    %220 = vmatprep.subr.bf16.mxu0 0
    %221 = vmatpush1.bf16.msra.mxu0 %v194
    %222 = vmatprep.subr.bf16.mxu0 0
    %223 = vmatpush2.bf16.msra.mxu0 0
    %224 = vmatprep.subr.bf16.mxu0 0
    %225 = vmatpush2.bf16.msra.mxu0 0
    %226 = vmatprep.subr.bf16.mxu0 0
    %227 = vmatpush2.bf16.msra.mxu0 0
    %228 = vmatprep.subr.bf16.mxu0 0
    %229 = vmatpush2.bf16.msra.mxu0 0
    %230 = vmatprep.subr.bf16.mxu0 0
    %231 = vmatpush2.bf16.msra.mxu0 0
    %232 = vmatprep.subr.bf16.mxu0 0
    %233 = vmatpush2.bf16.msra.mxu0 0
    %234 = vmatprep.subr.bf16.mxu0 0
    %235 = vmatpush2.bf16.msra.mxu0 0
    %236 = vmatprep.subr.bf16.mxu0 0
    %237 = vmatpush2.bf16.msra.mxu0 0
    %238 = vmatprep.mubr.bf16.mxu0 0
    %239 = vmatmul.mubr.bf16.gmra.mxu0 %v204
    %v240 = vpop.f32.mrf.mxu0
    %v241 = vadd.f32 %v176, %v240
    %v242 = vpop.f32.mrf.mxu0
    %v243 = vpop.f32.mrf.mxu0
    %v244 = vpop.f32.mrf.mxu0
    %245 = vdwg.mxu0
    %v246 = vmax.f32 %v241, 0.0
    %v247 = vpack.c.bf16 %v246, %v246
    %v248 = vld [vmem:[#allocation8] sm:$0xf]
    %v249 = vld [vmem:[#allocation8 + $0x4] sm:$0xf]
    %v250 = vld [vmem:[#allocation8 + $0x8] sm:$0xf]
    %v251 = vld [vmem:[#allocation8 + $0xc] sm:$0xf]
    %v252 = vld [vmem:[#allocation8 + $0x10] sm:$0xf]
    %v253 = vld [vmem:[#allocation8 + $0x14] sm:$0xf]
    %v254 = vld [vmem:[#allocation8 + $0x18] sm:$0xf]
    %v255 = vld [vmem:[#allocation8 + $0x1c] sm:$0xf]
    %v256 = vld [vmem:[%s6] sm:$0x1]
    %v258 = vlaneseq
    %v259 = vshrl.u32 %v258, 7
    %v260 = vsub.s32 0, %v259
    %v261 = vrot.slane %v256, %v260
    %v271 = vunpack.c.l.b16 %v248
    %v272 = vunpack.c.l.b16 %v249
    %v273 = vunpack.c.l.b16 %v250
    %v274 = vunpack.c.l.b16 %v251
    %v275 = vunpack.c.l.b16 %v252
    %v276 = vunpack.c.l.b16 %v253
    %v277 = vunpack.c.l.b16 %v254
    %v278 = vunpack.c.l.b16 %v255
    %v279 = vpack.c.b16 %v272, %v271
    %v280 = vpack.c.b16 %v274, %v273
    %v281 = vpack.c.b16 %v276, %v275
    %v282 = vpack.c.b16 %v278, %v277
    %v288 = vsel %vm202, %v247, 0
    %290 = vmatprep.subr.bf16.mxu0 0
    %291 = vmatpush1.bf16.msra.mxu0 0
    %292 = vmatprep.subr.bf16.mxu0 0
    %293 = vmatpush1.bf16.msra.mxu0 0
    %294 = vmatprep.subr.bf16.mxu0 0
    %295 = vmatpush1.bf16.msra.mxu0 0
    %296 = vmatprep.subr.bf16.mxu0 0
    %297 = vmatpush1.bf16.msra.mxu0 0
    %298 = vmatprep.subr.bf16.mxu0 0
    %299 = vmatpush1.bf16.msra.mxu0 %v282
    %300 = vmatprep.subr.bf16.mxu0 0
    %301 = vmatpush1.bf16.msra.mxu0 %v281
    %302 = vmatprep.subr.bf16.mxu0 0
    %303 = vmatpush1.bf16.msra.mxu0 %v280
    %304 = vmatprep.subr.bf16.mxu0 0
    %305 = vmatpush1.bf16.msra.mxu0 %v279
    %306 = vmatprep.subr.bf16.mxu0 0
    %307 = vmatpush2.bf16.msra.mxu0 0
    %308 = vmatprep.subr.bf16.mxu0 0
    %309 = vmatpush2.bf16.msra.mxu0 0
    %310 = vmatprep.subr.bf16.mxu0 0
    %311 = vmatpush2.bf16.msra.mxu0 0
    %312 = vmatprep.subr.bf16.mxu0 0
    %313 = vmatpush2.bf16.msra.mxu0 0
    %314 = vmatprep.subr.bf16.mxu0 0
    %315 = vmatpush2.bf16.msra.mxu0 0
    %316 = vmatprep.subr.bf16.mxu0 0
    %317 = vmatpush2.bf16.msra.mxu0 0
    %318 = vmatprep.subr.bf16.mxu0 0
    %319 = vmatpush2.bf16.msra.mxu0 0
    %320 = vmatprep.subr.bf16.mxu0 0
    %321 = vmatpush2.bf16.msra.mxu0 0
    %322 = vmatprep.mubr.bf16.mxu0 0
    %323 = vmatmul.mubr.bf16.gmra.mxu0 %v288
    %v324 = vpop.f32.mrf.mxu0
    %v325 = vadd.f32 %v261, %v324
    %v326 = vpop.f32.mrf.mxu0
    %v327 = vpop.f32.mrf.mxu0
    %v328 = vpop.f32.mrf.mxu0
    %329 = vdwg.mxu0
    %v330 = vmax.f32 %v325, 0.0
    %v331 = vpack.c.bf16 %v330, %v330
    %v332 = vld [vmem:[#allocation10] sm:$0xf]
    %v333 = vld [vmem:[#allocation10 + $0x4] sm:$0xf]
    %v334 = vld [vmem:[#allocation10 + $0x8] sm:$0xf]
    %v335 = vld [vmem:[#allocation10 + $0xc] sm:$0xf]
    %v336 = vld [vmem:[#allocation10 + $0x10] sm:$0xf]
    %v337 = vld [vmem:[#allocation10 + $0x14] sm:$0xf]
    %v338 = vld [vmem:[#allocation10 + $0x18] sm:$0xf]
    %v339 = vld [vmem:[#allocation10 + $0x1c] sm:$0xf]
    %v340 = vld [vmem:[#allocation10 + $0x20] sm:$0xf]
    %v341 = vld [vmem:[#allocation10 + $0x24] sm:$0xf]
    %v342 = vld [vmem:[#allocation10 + $0x28] sm:$0xf]
    %v343 = vld [vmem:[#allocation10 + $0x2c] sm:$0xf]
    %v344 = vld [vmem:[#allocation10 + $0x30] sm:$0xf]
    %v345 = vld [vmem:[#allocation10 + $0x34] sm:$0xf]
    %v346 = vld [vmem:[#allocation10 + $0x38] sm:$0xf]
    %v347 = vld [vmem:[#allocation10 + $0x3c] sm:$0xf]
    %v364 = vunpack.c.l.b16 %v332
    %v365 = vunpack.c.l.b16 %v333
    %v366 = vunpack.c.l.b16 %v334
    %v367 = vunpack.c.l.b16 %v335
    %v368 = vunpack.c.l.b16 %v336
    %v369 = vunpack.c.l.b16 %v337
    %v370 = vunpack.c.l.b16 %v338
    %v371 = vunpack.c.l.b16 %v339
    %v372 = vunpack.c.l.b16 %v340
    %v373 = vunpack.c.l.b16 %v341
    %v374 = vunpack.c.l.b16 %v342
    %v375 = vunpack.c.l.b16 %v343
    %v376 = vunpack.c.l.b16 %v344
    %v377 = vunpack.c.l.b16 %v345
    %v378 = vunpack.c.l.b16 %v346
    %v379 = vunpack.c.l.b16 %v347
    %v380 = vpack.c.b16 %v365, %v364
    %v381 = vpack.c.b16 %v367, %v366
    %v382 = vpack.c.b16 %v369, %v368
    %v383 = vpack.c.b16 %v371, %v370
    %v384 = vpack.c.b16 %v373, %v372
    %v385 = vpack.c.b16 %v375, %v374
    %v386 = vpack.c.b16 %v377, %v376
    %v387 = vpack.c.b16 %v379, %v378
    %396 = vmatprep.subr.bf16.mxu0 0
    %397 = vmatpush1.bf16.msra.mxu0 %v387
    %398 = vmatprep.subr.bf16.mxu0 0
    %399 = vmatpush1.bf16.msra.mxu0 %v386
    %400 = vmatprep.subr.bf16.mxu0 0
    %401 = vmatpush1.bf16.msra.mxu0 %v385
    %402 = vmatprep.subr.bf16.mxu0 0
    %403 = vmatpush1.bf16.msra.mxu0 %v384
    %404 = vmatprep.subr.bf16.mxu0 0
    %405 = vmatpush1.bf16.msra.mxu0 %v383
    %406 = vmatprep.subr.bf16.mxu0 0
    %407 = vmatpush1.bf16.msra.mxu0 %v382
    %408 = vmatprep.subr.bf16.mxu0 0
    %409 = vmatpush1.bf16.msra.mxu0 %v381
    %410 = vmatprep.subr.bf16.mxu0 0
    %411 = vmatpush1.bf16.msra.mxu0 %v380
    %412 = vmatprep.subr.bf16.mxu0 0
    %413 = vmatpush2.bf16.msra.mxu0 0
    %414 = vmatprep.subr.bf16.mxu0 0
    %415 = vmatpush2.bf16.msra.mxu0 0
    %416 = vmatprep.subr.bf16.mxu0 0
    %417 = vmatpush2.bf16.msra.mxu0 0
    %418 = vmatprep.subr.bf16.mxu0 0
    %419 = vmatpush2.bf16.msra.mxu0 0
    %420 = vmatprep.subr.bf16.mxu0 0
    %421 = vmatpush2.bf16.msra.mxu0 0
    %422 = vmatprep.subr.bf16.mxu0 0
    %423 = vmatpush2.bf16.msra.mxu0 0
    %424 = vmatprep.subr.bf16.mxu0 0
    %425 = vmatpush2.bf16.msra.mxu0 0
    %426 = vmatprep.subr.bf16.mxu0 0
    %427 = vmatpush2.bf16.msra.mxu0 0
    %428 = vmatprep.mubr.bf16.mxu0 0
    %429 = vmatmul.mubr.bf16.gmra.mxu0 %v331
    %v430 = vpop.f32.mrf.mxu0
    %v431 = vadd.f32 0.0, %v430
    %v432 = vpop.f32.mrf.mxu0
    %v433 = vpop.f32.mrf.mxu0
    %v434 = vpop.f32.mrf.mxu0
    %435 = vdwg.mxu0
    %v436 = vld [vmem:[%s8] sm:$0x1]
    %v438 = vlaneseq
    %v439 = vshrl.u32 %v438, 7
    %v440 = vsub.s32 0, %v439
    %v441 = vrot.slane %v436, %v440
    %v443 = vadd.f32 %v431, %v441
    %vm444 = vcmask 64512
    %445 = vst.msk [vmem:[#allocation11] sm:$0xff] %vm444, %v443
    // Predicated region
    $region58: #{tpu_custom_call.1} parent=1 // pred_check
      _
    $region59: #{tpu_custom_call.1} parent=1 // pred_check_branch
      %447 = sbr.rel (0) target = $region61
    $region60: #{tpu_custom_call.1} parent=1 // pred_region
      %s449 = ssub.s32 128, 128
      %450 = vsyncadd [#allocation4], %s449
      %s452 = sshll.u32 [#allocation11], 4
      %s453 = int_to_ptr.vmem [resolvable:$true] %s452
      %455 = dma.vmem_to_hbm [thread:$0]  %s453, 128, %s9, [#allocation4]
    $region61: #{tpu_custom_call.1} parent=1 // pred_fallthru
      _
    // Predicated region
    $region62: #{tpu_custom_call.1} parent=1 // pred_check
      _
    $region63: #{tpu_custom_call.1} parent=1 // pred_check_branch
      %457 = sbr.rel (0) target = $region65
    $region64: #{tpu_custom_call.1} parent=1 // pred_region
      %458 = dma.done [#allocation4], 128
    $region65: #{tpu_custom_call.1} parent=1 // pred_fallthru
      _
    %459 = vsyncpa [#allocation3], 1
    %460 = vsyncpa [#allocation6], 1
    %461 = vsyncpa [#allocation9], 1
    %462 = vsyncpa [#allocation4], 1

</llo_original>
